<compile_context>
chip_gen: v5e
topology: v5e:2x2
jax: 0.10.0
libtpu: 0.0.40
codegen_flags: <defaults>
</compile_context>

<pallas_src>
import jax
import jax.numpy as jnp
from jax import lax
from jax.experimental import pallas as pl
from jax.experimental.pallas import tpu as pltpu


def skipgram_kernel(ids_ref, emb_ref, wt_ref, b_ref, out_ref, x_scratch):
    """Per V-tile: gather (B, E) rows -> (B, E) @ (E, TILE_V) on MXU -> +bias."""
    B, E = x_scratch.shape

    # Real gather: one embedding row per batch element via dynamic-slice copies
    # driven by SMEM scalars (O(B*E), vs O(B*V*E) for the old one-hot matmul).
    def gather_row(b, carry):
        idx = ids_ref[b]                                   # int32 scalar from SMEM
        x_scratch[pl.ds(b, 1), :] = emb_ref[pl.ds(idx, 1), :]
        return carry

    lax.fori_loop(0, B, gather_row, 0, unroll=True)

    # Projection on the MXU: W was pre-transposed in the wrapper, so this is a
    # plain (B, E) @ (E, TILE_V) matmul with f32 accumulation and a lane-dense
    # output tile.
    logits = jnp.dot(x_scratch[...], wt_ref[...],
                     preferred_element_type=jnp.float32)   # (B, TILE_V)
    out_ref[...] = logits + b_ref[...]


def skipgram_forward(input_ids, emb_table, lin_w, lin_b, *, tile_v=None):
    B = input_ids.shape[0]
    V, E = emb_table.shape
    assert lin_w.shape == (V, E) and lin_b.shape == (V,)

    if tile_v is None:
        tile_v = min(512, V)            # lane-dense tile (multiple of 128 at real V)
    assert V % tile_v == 0, "vocab_size must be divisible by tile_v"

    ids = input_ids.astype(jnp.int32)   # scalar-prefetch operand (lands in SMEM)
    wt = lin_w.T                        # (E, V): one-time transpose in the wrapper
    bias2d = lin_b.reshape(1, V)        # lane-dense bias layout

    cost = pl.CostEstimate(
        flops=2 * B * E * V,            # projection dominates; gather is O(B*E)
        transcendentals=0,
        bytes_accessed=4 * (B + V * E + E * V + V + B * V),
    )

    return pl.pallas_call(
        skipgram_kernel,
        out_shape=jax.ShapeDtypeStruct((B, V), jnp.float32),
        grid_spec=pltpu.PrefetchScalarGridSpec(
            num_scalar_prefetch=1,
            grid=(V // tile_v,),
            in_specs=[
                # Embedding table: resident across all V tiles (constant block idx).
                pl.BlockSpec((V, E), lambda j, ids: (0, 0)),
                # Pre-transposed weight: (E, TILE_V) tile, streamed/double-buffered.
                pl.BlockSpec((E, tile_v), lambda j, ids: (0, j)),
                # Bias tile.
                pl.BlockSpec((1, tile_v), lambda j, ids: (0, j)),
            ],
            out_specs=pl.BlockSpec((B, tile_v), lambda j, ids: (0, j)),
            scratch_shapes=[pltpu.VMEM((B, E), jnp.float32)],
        ),
        compiler_params=pltpu.CompilerParams(
            dimension_semantics=("parallel",),   # shard V tiles across TCs on v7x
        ),
        cost_estimate=cost,
    )(ids, emb_table, wt, bias2d)


if __name__ == "__main__":
    VOCAB_SIZE = 128
    EMBEDDING_DIM = 64
    BATCH = 16

    key = jax.random.PRNGKey(0)
    k_emb, k_w, k_b, k_ids = jax.random.split(key, 4)

    # Deterministic parameter init (shapes match nn.Embedding / nn.Linear).
    emb_table = jax.random.normal(k_emb, (VOCAB_SIZE, EMBEDDING_DIM), jnp.float32)
    lin_w = jax.random.normal(k_w, (VOCAB_SIZE, EMBEDDING_DIM), jnp.float32) * 0.1
    lin_b = jax.random.normal(k_b, (VOCAB_SIZE,), jnp.float32) * 0.1
    input_ids = jax.random.randint(k_ids, (BATCH,), 0, VOCAB_SIZE, jnp.int32)

    out = skipgram_forward(input_ids, emb_table, lin_w, lin_b)
    out = jax.block_until_ready(out)

    # Pure-JAX reference for correctness.
    ref = emb_table[input_ids] @ lin_w.T + lin_b
    assert out.shape == (BATCH, VOCAB_SIZE)
    assert jnp.allclose(out, ref, atol=1e-4, rtol=1e-4)

    print("KERNEL_OK")
</pallas_src>

<mosaic_0001>
module attributes {stable_mosaic.version = 11 : i64} {
  func.func @skipgram_kernel(%arg0: i32, %arg1: memref<16xi32, #tpu.memory_space<smem>>, %arg2: memref<128x64xf32, #tpu.memory_space<vmem>>, %arg3: memref<64x128xf32, #tpu.memory_space<vmem>>, %arg4: memref<1x128xf32, #tpu.memory_space<vmem>>, %arg5: memref<16x128xf32, #tpu.memory_space<vmem>>, %arg6: memref<16x64xf32, #tpu.memory_space<vmem>>) attributes {dimension_semantics = [#tpu.dimension_semantics<parallel>], iteration_bounds = array<i64: 1>, scalar_prefetch = 1 : i64, scratch_operands = 1 : i64, tpu.core_type = #tpu.core_type<tc>, window_params = [{pipeline_mode = #tpu.pipeline_mode<synchronous>, transform_indices = @transform_0, window_bounds = array<i64: 128, 64>}, {transform_indices = @transform_1, window_bounds = array<i64: 64, 128>}, {transform_indices = @transform_2, window_bounds = array<i64: 1, 128>}, {transform_indices = @transform_3, window_bounds = array<i64: 16, 128>}]} {
    %c0_i32 = arith.constant 0 : i32
    %0 = arith.index_cast %c0_i32 : i32 to index
    %1 = memref.load %arg1[%0] : memref<16xi32, #tpu.memory_space<smem>>
    %2 = arith.index_cast %1 : i32 to index
    %c0 = arith.constant 0 : index
    %3 = vector.load %arg2[%2, %c0] : memref<128x64xf32, #tpu.memory_space<vmem>>, vector<1x64xf32>
    %4 = arith.index_cast %c0_i32 : i32 to index
    %c0_0 = arith.constant 0 : index
    %5 = vector.load %arg6[%4, %c0_0] : memref<16x64xf32, #tpu.memory_space<vmem>>, vector<1x64xf32>
    tpu.vector_store %arg6[%4, %c0_0], %3 {strides = array<i32>} : memref<16x64xf32, #tpu.memory_space<vmem>>, vector<1x64xf32>,
    %c1_i32 = arith.constant 1 : i32
    %6 = arith.index_cast %c1_i32 : i32 to index
    %7 = memref.load %arg1[%6] : memref<16xi32, #tpu.memory_space<smem>>
    %8 = arith.index_cast %7 : i32 to index
    %c0_1 = arith.constant 0 : index
    %9 = vector.load %arg2[%8, %c0_1] : memref<128x64xf32, #tpu.memory_space<vmem>>, vector<1x64xf32>
    %10 = arith.index_cast %c1_i32 : i32 to index
    %c0_2 = arith.constant 0 : index
    %11 = vector.load %arg6[%10, %c0_2] : memref<16x64xf32, #tpu.memory_space<vmem>>, vector<1x64xf32>
    tpu.vector_store %arg6[%10, %c0_2], %9 {strides = array<i32>} : memref<16x64xf32, #tpu.memory_space<vmem>>, vector<1x64xf32>,
    %c2_i32 = arith.constant 2 : i32
    %12 = arith.index_cast %c2_i32 : i32 to index
    %13 = memref.load %arg1[%12] : memref<16xi32, #tpu.memory_space<smem>>
    %14 = arith.index_cast %13 : i32 to index
    %c0_3 = arith.constant 0 : index
    %15 = vector.load %arg2[%14, %c0_3] : memref<128x64xf32, #tpu.memory_space<vmem>>, vector<1x64xf32>
    %16 = arith.index_cast %c2_i32 : i32 to index
    %c0_4 = arith.constant 0 : index
    %17 = vector.load %arg6[%16, %c0_4] : memref<16x64xf32, #tpu.memory_space<vmem>>, vector<1x64xf32>
    tpu.vector_store %arg6[%16, %c0_4], %15 {strides = array<i32>} : memref<16x64xf32, #tpu.memory_space<vmem>>, vector<1x64xf32>,
    %c3_i32 = arith.constant 3 : i32
    %18 = arith.index_cast %c3_i32 : i32 to index
    %19 = memref.load %arg1[%18] : memref<16xi32, #tpu.memory_space<smem>>
    %20 = arith.index_cast %19 : i32 to index
    %c0_5 = arith.constant 0 : index
    %21 = vector.load %arg2[%20, %c0_5] : memref<128x64xf32, #tpu.memory_space<vmem>>, vector<1x64xf32>
    %22 = arith.index_cast %c3_i32 : i32 to index
    %c0_6 = arith.constant 0 : index
    %23 = vector.load %arg6[%22, %c0_6] : memref<16x64xf32, #tpu.memory_space<vmem>>, vector<1x64xf32>
    tpu.vector_store %arg6[%22, %c0_6], %21 {strides = array<i32>} : memref<16x64xf32, #tpu.memory_space<vmem>>, vector<1x64xf32>,
    %c4_i32 = arith.constant 4 : i32
    %24 = arith.index_cast %c4_i32 : i32 to index
    %25 = memref.load %arg1[%24] : memref<16xi32, #tpu.memory_space<smem>>
    %26 = arith.index_cast %25 : i32 to index
    %c0_7 = arith.constant 0 : index
    %27 = vector.load %arg2[%26, %c0_7] : memref<128x64xf32, #tpu.memory_space<vmem>>, vector<1x64xf32>
    %28 = arith.index_cast %c4_i32 : i32 to index
    %c0_8 = arith.constant 0 : index
    %29 = vector.load %arg6[%28, %c0_8] : memref<16x64xf32, #tpu.memory_space<vmem>>, vector<1x64xf32>
    tpu.vector_store %arg6[%28, %c0_8], %27 {strides = array<i32>} : memref<16x64xf32, #tpu.memory_space<vmem>>, vector<1x64xf32>,
    %c5_i32 = arith.constant 5 : i32
    %30 = arith.index_cast %c5_i32 : i32 to index
    %31 = memref.load %arg1[%30] : memref<16xi32, #tpu.memory_space<smem>>
    %32 = arith.index_cast %31 : i32 to index
    %c0_9 = arith.constant 0 : index
    %33 = vector.load %arg2[%32, %c0_9] : memref<128x64xf32, #tpu.memory_space<vmem>>, vector<1x64xf32>
    %34 = arith.index_cast %c5_i32 : i32 to index
    %c0_10 = arith.constant 0 : index
    %35 = vector.load %arg6[%34, %c0_10] : memref<16x64xf32, #tpu.memory_space<vmem>>, vector<1x64xf32>
    tpu.vector_store %arg6[%34, %c0_10], %33 {strides = array<i32>} : memref<16x64xf32, #tpu.memory_space<vmem>>, vector<1x64xf32>,
    %c6_i32 = arith.constant 6 : i32
    %36 = arith.index_cast %c6_i32 : i32 to index
    %37 = memref.load %arg1[%36] : memref<16xi32, #tpu.memory_space<smem>>
    %38 = arith.index_cast %37 : i32 to index
    %c0_11 = arith.constant 0 : index
    %39 = vector.load %arg2[%38, %c0_11] : memref<128x64xf32, #tpu.memory_space<vmem>>, vector<1x64xf32>
    %40 = arith.index_cast %c6_i32 : i32 to index
    %c0_12 = arith.constant 0 : index
    %41 = vector.load %arg6[%40, %c0_12] : memref<16x64xf32, #tpu.memory_space<vmem>>, vector<1x64xf32>
    tpu.vector_store %arg6[%40, %c0_12], %39 {strides = array<i32>} : memref<16x64xf32, #tpu.memory_space<vmem>>, vector<1x64xf32>,
    %c7_i32 = arith.constant 7 : i32
    %42 = arith.index_cast %c7_i32 : i32 to index
    %43 = memref.load %arg1[%42] : memref<16xi32, #tpu.memory_space<smem>>
    %44 = arith.index_cast %43 : i32 to index
    %c0_13 = arith.constant 0 : index
    %45 = vector.load %arg2[%44, %c0_13] : memref<128x64xf32, #tpu.memory_space<vmem>>, vector<1x64xf32>
    %46 = arith.index_cast %c7_i32 : i32 to index
    %c0_14 = arith.constant 0 : index
    %47 = vector.load %arg6[%46, %c0_14] : memref<16x64xf32, #tpu.memory_space<vmem>>, vector<1x64xf32>
    tpu.vector_store %arg6[%46, %c0_14], %45 {strides = array<i32>} : memref<16x64xf32, #tpu.memory_space<vmem>>, vector<1x64xf32>,
    %c8_i32 = arith.constant 8 : i32
    %48 = arith.index_cast %c8_i32 : i32 to index
    %49 = memref.load %arg1[%48] : memref<16xi32, #tpu.memory_space<smem>>
    %50 = arith.index_cast %49 : i32 to index
    %c0_15 = arith.constant 0 : index
    %51 = vector.load %arg2[%50, %c0_15] : memref<128x64xf32, #tpu.memory_space<vmem>>, vector<1x64xf32>
    %52 = arith.index_cast %c8_i32 : i32 to index
    %c0_16 = arith.constant 0 : index
    %53 = vector.load %arg6[%52, %c0_16] : memref<16x64xf32, #tpu.memory_space<vmem>>, vector<1x64xf32>
    tpu.vector_store %arg6[%52, %c0_16], %51 {strides = array<i32>} : memref<16x64xf32, #tpu.memory_space<vmem>>, vector<1x64xf32>,
    %c9_i32 = arith.constant 9 : i32
    %54 = arith.index_cast %c9_i32 : i32 to index
    %55 = memref.load %arg1[%54] : memref<16xi32, #tpu.memory_space<smem>>
    %56 = arith.index_cast %55 : i32 to index
    %c0_17 = arith.constant 0 : index
    %57 = vector.load %arg2[%56, %c0_17] : memref<128x64xf32, #tpu.memory_space<vmem>>, vector<1x64xf32>
    %58 = arith.index_cast %c9_i32 : i32 to index
    %c0_18 = arith.constant 0 : index
    %59 = vector.load %arg6[%58, %c0_18] : memref<16x64xf32, #tpu.memory_space<vmem>>, vector<1x64xf32>
    tpu.vector_store %arg6[%58, %c0_18], %57 {strides = array<i32>} : memref<16x64xf32, #tpu.memory_space<vmem>>, vector<1x64xf32>,
    %c10_i32 = arith.constant 10 : i32
    %60 = arith.index_cast %c10_i32 : i32 to index
    %61 = memref.load %arg1[%60] : memref<16xi32, #tpu.memory_space<smem>>
    %62 = arith.index_cast %61 : i32 to index
    %c0_19 = arith.constant 0 : index
    %63 = vector.load %arg2[%62, %c0_19] : memref<128x64xf32, #tpu.memory_space<vmem>>, vector<1x64xf32>
    %64 = arith.index_cast %c10_i32 : i32 to index
    %c0_20 = arith.constant 0 : index
    %65 = vector.load %arg6[%64, %c0_20] : memref<16x64xf32, #tpu.memory_space<vmem>>, vector<1x64xf32>
    tpu.vector_store %arg6[%64, %c0_20], %63 {strides = array<i32>} : memref<16x64xf32, #tpu.memory_space<vmem>>, vector<1x64xf32>,
    %c11_i32 = arith.constant 11 : i32
    %66 = arith.index_cast %c11_i32 : i32 to index
    %67 = memref.load %arg1[%66] : memref<16xi32, #tpu.memory_space<smem>>
    %68 = arith.index_cast %67 : i32 to index
    %c0_21 = arith.constant 0 : index
    %69 = vector.load %arg2[%68, %c0_21] : memref<128x64xf32, #tpu.memory_space<vmem>>, vector<1x64xf32>
    %70 = arith.index_cast %c11_i32 : i32 to index
    %c0_22 = arith.constant 0 : index
    %71 = vector.load %arg6[%70, %c0_22] : memref<16x64xf32, #tpu.memory_space<vmem>>, vector<1x64xf32>
    tpu.vector_store %arg6[%70, %c0_22], %69 {strides = array<i32>} : memref<16x64xf32, #tpu.memory_space<vmem>>, vector<1x64xf32>,
    %c12_i32 = arith.constant 12 : i32
    %72 = arith.index_cast %c12_i32 : i32 to index
    %73 = memref.load %arg1[%72] : memref<16xi32, #tpu.memory_space<smem>>
    %74 = arith.index_cast %73 : i32 to index
    %c0_23 = arith.constant 0 : index
    %75 = vector.load %arg2[%74, %c0_23] : memref<128x64xf32, #tpu.memory_space<vmem>>, vector<1x64xf32>
    %76 = arith.index_cast %c12_i32 : i32 to index
    %c0_24 = arith.constant 0 : index
    %77 = vector.load %arg6[%76, %c0_24] : memref<16x64xf32, #tpu.memory_space<vmem>>, vector<1x64xf32>
    tpu.vector_store %arg6[%76, %c0_24], %75 {strides = array<i32>} : memref<16x64xf32, #tpu.memory_space<vmem>>, vector<1x64xf32>,
    %c13_i32 = arith.constant 13 : i32
    %78 = arith.index_cast %c13_i32 : i32 to index
    %79 = memref.load %arg1[%78] : memref<16xi32, #tpu.memory_space<smem>>
    %80 = arith.index_cast %79 : i32 to index
    %c0_25 = arith.constant 0 : index
    %81 = vector.load %arg2[%80, %c0_25] : memref<128x64xf32, #tpu.memory_space<vmem>>, vector<1x64xf32>
    %82 = arith.index_cast %c13_i32 : i32 to index
    %c0_26 = arith.constant 0 : index
    %83 = vector.load %arg6[%82, %c0_26] : memref<16x64xf32, #tpu.memory_space<vmem>>, vector<1x64xf32>
    tpu.vector_store %arg6[%82, %c0_26], %81 {strides = array<i32>} : memref<16x64xf32, #tpu.memory_space<vmem>>, vector<1x64xf32>,
    %c14_i32 = arith.constant 14 : i32
    %84 = arith.index_cast %c14_i32 : i32 to index
    %85 = memref.load %arg1[%84] : memref<16xi32, #tpu.memory_space<smem>>
    %86 = arith.index_cast %85 : i32 to index
    %c0_27 = arith.constant 0 : index
    %87 = vector.load %arg2[%86, %c0_27] : memref<128x64xf32, #tpu.memory_space<vmem>>, vector<1x64xf32>
    %88 = arith.index_cast %c14_i32 : i32 to index
    %c0_28 = arith.constant 0 : index
    %89 = vector.load %arg6[%88, %c0_28] : memref<16x64xf32, #tpu.memory_space<vmem>>, vector<1x64xf32>
    tpu.vector_store %arg6[%88, %c0_28], %87 {strides = array<i32>} : memref<16x64xf32, #tpu.memory_space<vmem>>, vector<1x64xf32>,
    %c15_i32 = arith.constant 15 : i32
    %90 = arith.index_cast %c15_i32 : i32 to index
    %91 = memref.load %arg1[%90] : memref<16xi32, #tpu.memory_space<smem>>
    %92 = arith.index_cast %91 : i32 to index
    %c0_29 = arith.constant 0 : index
    %93 = vector.load %arg2[%92, %c0_29] : memref<128x64xf32, #tpu.memory_space<vmem>>, vector<1x64xf32>
    %94 = arith.index_cast %c15_i32 : i32 to index
    %c0_30 = arith.constant 0 : index
    %95 = vector.load %arg6[%94, %c0_30] : memref<16x64xf32, #tpu.memory_space<vmem>>, vector<1x64xf32>
    tpu.vector_store %arg6[%94, %c0_30], %93 {strides = array<i32>} : memref<16x64xf32, #tpu.memory_space<vmem>>, vector<1x64xf32>,
    %c16_i32 = arith.constant 16 : i32
    %c0_31 = arith.constant 0 : index
    %c0_32 = arith.constant 0 : index
    %96 = vector.load %arg6[%c0_31, %c0_32] : memref<16x64xf32, #tpu.memory_space<vmem>>, vector<16x64xf32>
    %c0_33 = arith.constant 0 : index
    %c0_34 = arith.constant 0 : index
    %97 = vector.load %arg3[%c0_33, %c0_34] : memref<64x128xf32, #tpu.memory_space<vmem>>, vector<64x128xf32>
    %cst = arith.constant dense<0.000000e+00> : vector<16x128xf32>
    %98 = tpu.matmul %96, %97, %cst {dimension_numbers = #tpu.dot_dimension_numbers<[1], [0], [0], [1], [0, 0, 1, 1], [], []>} : vector<16x64xf32>, vector<64x128xf32>, vector<16x128xf32> -> vector<16x128xf32>
    %c0_35 = arith.constant 0 : index
    %c0_36 = arith.constant 0 : index
    %99 = vector.load %arg4[%c0_35, %c0_36] : memref<1x128xf32, #tpu.memory_space<vmem>>, vector<1x128xf32>
    %100 = vector.broadcast %99 : vector<1x128xf32> to vector<16x128xf32>
    %101 = arith.addf %98, %100 : vector<16x128xf32>
    %c0_37 = arith.constant 0 : index
    %c0_38 = arith.constant 0 : index
    %102 = vector.load %arg5[%c0_37, %c0_38] : memref<16x128xf32, #tpu.memory_space<vmem>>, vector<16x128xf32>
    tpu.vector_store %arg5[%c0_37, %c0_38], %101 {strides = array<i32>} : memref<16x128xf32, #tpu.memory_space<vmem>>, vector<16x128xf32>,
    return
  }
  func.func @transform_0(%arg0: i32, %arg1: memref<16xi32, #tpu.memory_space<smem>>) -> (i32, i32) {
    %c0_i32 = arith.constant 0 : i32
    %c0_i32_0 = arith.constant 0 : i32
    %c0_i32_1 = arith.constant 0 : i32
    return %c0_i32, %c0_i32_0 : i32, i32
  }
  func.func @transform_1(%arg0: i32, %arg1: memref<16xi32, #tpu.memory_space<smem>>) -> (i32, i32) {
    %c0_i32 = arith.constant 0 : i32
    %c0_i32_0 = arith.constant 0 : i32
    return %c0_i32, %arg0 : i32, i32
  }
  func.func @transform_2(%arg0: i32, %arg1: memref<16xi32, #tpu.memory_space<smem>>) -> (i32, i32) {
    %c0_i32 = arith.constant 0 : i32
    %c0_i32_0 = arith.constant 0 : i32
    return %c0_i32, %arg0 : i32, i32
  }
  func.func @transform_3(%arg0: i32, %arg1: memref<16xi32, #tpu.memory_space<smem>>) -> (i32, i32) {
    %c0_i32 = arith.constant 0 : i32
    %c0_i32_0 = arith.constant 0 : i32
    return %c0_i32, %arg0 : i32, i32
  }
}

</mosaic_0001>

<llo_original>
// kernel: tpu_custom_call.1
$region0: #{tpu_custom_call.1}
  #allocation0 [shape = 'u32[]', space=smem, size = 0x4, offset = 0x4, fixed_abs, tag = 'smem constant byte address 0x4 - core index']
  #allocation1 [shape = 'u32[72,128]{1,0:T(1,128)}', space=vmem, size = 0x9000, scoped, tag = 'internal scratch']
  #allocation2 [shape = 'f32[16,64]{1,0:T(8,128)}', space=vmem, size = 0x2000, scoped, tag = 'scratch operand']
  #allocation3 [shape = 's32[1]{0}', space=sflag, size = 0x4, scoped, tag = 'scoped memory for tpu_custom_call.1']
  #allocation4 [shape = 'u8[512]{0}', space=smem, size = 0x200, scoped, tag = 'prefetched SMEM operand 0']
  %s0 = inlined_call_operand.vmem [shape: s32[16], index: 0, kind: input, shape index: {}]
  %s1 = inlined_call_operand.vmem [shape: f32[128,64], index: 1, kind: input, shape index: {}]
  %s2 = inlined_call_operand.vmem [shape: f32[64,128], index: 2, kind: input, shape index: {}]
  %s3 = inlined_call_operand.vmem [shape: f32[1,128], index: 3, kind: input, shape index: {}]
  %s4 = inlined_call_operand.hbm [shape: f32[16,128], index: 4, kind: output, shape index: {}]
  %s5 = sld [smem:[#allocation0]]
  $region22: #{tpu_custom_call.1} parent=0
    _
  %s7 = ssub.s32 1, %s5
  %s8 = scalar_select 0, %s7, %s5
  %s10 = sshll.u32 %s0, 4
  %s11 = int_to_ptr.vmem [resolvable:$true] %s10
  %13 = dma.vmem_to_smem %s11, 16, [#allocation4], [#allocation3]
  %15 = dma.done [#allocation3], 16
  %16 = sfence
  $region1: #{tpu_custom_call.1} parent=0
    #allocation5 [shape = 'u8[8192]{0}', space=vmem, size = 0x2000, scoped, tag = 'output window, operand 0, single buffered']
    #allocation6 [shape = 's32[1]{0}', space=sflag, size = 0x4, scoped, tag = 'scoped memory for tpu_custom_call.1']
    %17 = vsyncpa [#allocation6], 0
    // Predicated region
    $region2: #{tpu_custom_call.1} parent=1 // pred_check
      _
    $region3: #{tpu_custom_call.1} parent=1 // pred_check_branch
      %19 = sbr.rel (0) target = $region5
    $region4: #{tpu_custom_call.1} parent=1 // pred_region
      _
    $region5: #{tpu_custom_call.1} parent=1 // pred_fallthru
      _
    // Predicated region
    $region6: #{tpu_custom_call.1} parent=1 // pred_check
      _
    $region7: #{tpu_custom_call.1} parent=1 // pred_check_branch
      %21 = sbr.rel (0) target = $region9
    $region8: #{tpu_custom_call.1} parent=1 // pred_region
      _
    $region9: #{tpu_custom_call.1} parent=1 // pred_fallthru
      _
    // Predicated region
    $region10: #{tpu_custom_call.1} parent=1 // pred_check
      _
    $region11: #{tpu_custom_call.1} parent=1 // pred_check_branch
      %23 = sbr.rel (0) target = $region13
    $region12: #{tpu_custom_call.1} parent=1 // pred_region
      _
    $region13: #{tpu_custom_call.1} parent=1 // pred_fallthru
      _
    %s24 = sld [smem:[#allocation4]]
    %s25 = scalar_lea.vmem %s1, %s24
    %v26 = vld [vmem:[%s25] sm:$0x1]
    %vm27 = vcmask 516096
    %28 = vst.msk [vmem:[#allocation2] sm:$0x1] %vm27, %v26
    %s29 = sld [smem:[#allocation4 + $0x1]]
    %s30 = scalar_lea.vmem %s1, %s29
    %v31 = vld [vmem:[%s30] sm:$0x1]
    %32 = vst.msk [vmem:[#allocation2 + $0x1] sm:$0x1] %vm27, %v31
    %s33 = sld [smem:[#allocation4 + $0x2]]
    %s34 = scalar_lea.vmem %s1, %s33
    %v35 = vld [vmem:[%s34] sm:$0x1]
    %36 = vst.msk [vmem:[#allocation2 + $0x2] sm:$0x1] %vm27, %v35
    %s37 = sld [smem:[#allocation4 + $0x3]]
    %s38 = scalar_lea.vmem %s1, %s37
    %v39 = vld [vmem:[%s38] sm:$0x1]
    %40 = vst.msk [vmem:[#allocation2 + $0x3] sm:$0x1] %vm27, %v39
    %s41 = sld [smem:[#allocation4 + $0x4]]
    %s42 = scalar_lea.vmem %s1, %s41
    %v43 = vld [vmem:[%s42] sm:$0x1]
    %44 = vst.msk [vmem:[#allocation2 + $0x4] sm:$0x1] %vm27, %v43
    %s45 = sld [smem:[#allocation4 + $0x5]]
    %s46 = scalar_lea.vmem %s1, %s45
    %v47 = vld [vmem:[%s46] sm:$0x1]
    %48 = vst.msk [vmem:[#allocation2 + $0x5] sm:$0x1] %vm27, %v47
    %s49 = sld [smem:[#allocation4 + $0x6]]
    %s50 = scalar_lea.vmem %s1, %s49
    %v51 = vld [vmem:[%s50] sm:$0x1]
    %52 = vst.msk [vmem:[#allocation2 + $0x6] sm:$0x1] %vm27, %v51
    %s53 = sld [smem:[#allocation4 + $0x7]]
    %s54 = scalar_lea.vmem %s1, %s53
    %v55 = vld [vmem:[%s54] sm:$0x1]
    %56 = vst.msk [vmem:[#allocation2 + $0x7] sm:$0x1] %vm27, %v55
    %s57 = sld [smem:[#allocation4 + $0x8]]
    %s58 = scalar_lea.vmem %s1, %s57
    %v59 = vld [vmem:[%s58] sm:$0x1]
    %60 = vst.msk [vmem:[#allocation2 + $0x8] sm:$0x1] %vm27, %v59
    %s61 = sld [smem:[#allocation4 + $0x9]]
    %s62 = scalar_lea.vmem %s1, %s61
    %v63 = vld [vmem:[%s62] sm:$0x1]
    %64 = vst.msk [vmem:[#allocation2 + $0x9] sm:$0x1] %vm27, %v63
    %s65 = sld [smem:[#allocation4 + $0xa]]
    %s66 = scalar_lea.vmem %s1, %s65
    %v67 = vld [vmem:[%s66] sm:$0x1]
    %68 = vst.msk [vmem:[#allocation2 + $0xa] sm:$0x1] %vm27, %v67
    %s69 = sld [smem:[#allocation4 + $0xb]]
    %s70 = scalar_lea.vmem %s1, %s69
    %v71 = vld [vmem:[%s70] sm:$0x1]
    %72 = vst.msk [vmem:[#allocation2 + $0xb] sm:$0x1] %vm27, %v71
    %s73 = sld [smem:[#allocation4 + $0xc]]
    %s74 = scalar_lea.vmem %s1, %s73
    %v75 = vld [vmem:[%s74] sm:$0x1]
    %76 = vst.msk [vmem:[#allocation2 + $0xc] sm:$0x1] %vm27, %v75
    %s77 = sld [smem:[#allocation4 + $0xd]]
    %s78 = scalar_lea.vmem %s1, %s77
    %v79 = vld [vmem:[%s78] sm:$0x1]
    %80 = vst.msk [vmem:[#allocation2 + $0xd] sm:$0x1] %vm27, %v79
    %s81 = sld [smem:[#allocation4 + $0xe]]
    %s82 = scalar_lea.vmem %s1, %s81
    %v83 = vld [vmem:[%s82] sm:$0x1]
    %84 = vst.msk [vmem:[#allocation2 + $0xe] sm:$0x1] %vm27, %v83
    %s85 = sld [smem:[#allocation4 + $0xf]]
    %s86 = scalar_lea.vmem %s1, %s85
    %v87 = vld [vmem:[%s86] sm:$0x1]
    %88 = vst.msk [vmem:[#allocation2 + $0xf] sm:$0x1] %vm27, %v87
    %v89 = vld [vmem:[#allocation2] sm:$0xff]
    %v90 = vld [vmem:[#allocation2 + $0x8] sm:$0xff]
    %v91 = vld [vmem:[%s2] sm:$0xff]
    %v92 = vld [vmem:[%s2 + $0x8] sm:$0xff]
    %v93 = vld [vmem:[%s2 + $0x10] sm:$0xff]
    %v94 = vld [vmem:[%s2 + $0x18] sm:$0xff]
    %v95 = vld [vmem:[%s2 + $0x20] sm:$0xff]
    %v96 = vld [vmem:[%s2 + $0x28] sm:$0xff]
    %v97 = vld [vmem:[%s2 + $0x30] sm:$0xff]
    %v98 = vld [vmem:[%s2 + $0x38] sm:$0xff]
    %v99 = vld [vmem:[%s3] sm:$0x1]
    %v101 = vperm.slane %v99, 0
    %vm103 = vcmask 523264
    %v105 = vsel %vm103, %v89, 0
    %v108 = vsel %vm103, %v90, 0
    %110 = vmatpush.msra.mxu0 0.0
    %111 = vmatpush.msra.mxu0 0.0
    %112 = vmatpush.msra.mxu0 0.0
    %113 = vmatpush.msra.mxu0 0.0
    %114 = vmatpush.msra.mxu0 0.0
    %115 = vmatpush.msra.mxu0 0.0
    %116 = vmatpush.msra.mxu0 0.0
    %117 = vmatpush.msra.mxu0 0.0
    %118 = vmatpush.msra.mxu0 %v98
    %119 = vmatpush.msra.mxu0 %v97
    %120 = vmatpush.msra.mxu0 %v96
    %121 = vmatpush.msra.mxu0 %v95
    %122 = vmatpush.msra.mxu0 %v94
    %123 = vmatpush.msra.mxu0 %v93
    %124 = vmatpush.msra.mxu0 %v92
    %125 = vmatpush.msra.mxu0 %v91
    %126 = vmatmul.f32.gmra.mxu0 %v105
    %v127 = vpop.f32.mrf.mxu0
    %v128 = vadd.f32 %v101, %v127
    %129 = vmatmul.f32.gmra.mxu0 %v108
    %v130 = vpop.f32.mrf.mxu0
    %v131 = vadd.f32 %v101, %v130
    %132 = vdwg.mxu0
    %133 = vst [vmem:[#allocation5] sm:$0xff] %v128
    %134 = vst [vmem:[#allocation5 + $0x8] sm:$0xff] %v131
    // Predicated region
    $region14: #{tpu_custom_call.1} parent=1 // pred_check
      _
    $region15: #{tpu_custom_call.1} parent=1 // pred_check_branch
      %136 = sbr.rel (0) target = $region17
    $region16: #{tpu_custom_call.1} parent=1 // pred_region
      %138 = vsyncadd [#allocation6], 0
      %s139 = sshll.u32 [#allocation5], 4
      %s140 = int_to_ptr.vmem [resolvable:$true] %s139
      %s141 = sshll.u32 %s4, 4
      %s142 = int_to_ptr.hbm [resolvable:$true] %s141
      %147 = dma.vmem_to_hbm [thread:$0]  %s140, 256, %s142, [#allocation6], 128, 128, 8
    $region17: #{tpu_custom_call.1} parent=1 // pred_fallthru
      _
    // Predicated region
    $region18: #{tpu_custom_call.1} parent=1 // pred_check
      _
    $region19: #{tpu_custom_call.1} parent=1 // pred_check_branch
      %149 = sbr.rel (0) target = $region21
    $region20: #{tpu_custom_call.1} parent=1 // pred_region
      %151 = dma.done [#allocation6], 256
    $region21: #{tpu_custom_call.1} parent=1 // pred_fallthru
      _
    %152 = vsyncpa [#allocation6], 1

</llo_original>
